<compile_context>
chip_gen: v7x
topology: tpu7x:2x2x1
jax: 0.10.0
libtpu: 0.0.40
codegen_flags: <defaults>
</compile_context>

<pallas_src>
import jax
import jax.numpy as jnp
from jax.experimental import pallas as pl
from jax.experimental.pallas import tpu as pltpu


_TILE_BUDGET_BYTES = 3 * 1024 * 1024    # one copy of the input tile (tn * cols * itemsize)
# Per step: 2x double-buffered input tile + 2x double-buffered (3, tn, cols) output tile
# = 8 * tile <= 24 MiB, under the explicit 32 MiB limit below (OK on v5e/v6e/v7x).
_VMEM_LIMIT_BYTES = 32 * 1024 * 1024


def cat_add_kernel(x_ref, o_ref):
    # Each replica slab of cat([x, x, x]) + itself is just x + x.
    v = x_ref[...] + x_ref[...]
    o_ref[0] = v
    o_ref[1] = v
    o_ref[2] = v


def _choose_lane_width(total, itemsize):
    """Largest last-dim width `cols` dividing `total`, preferring multiples of 128."""
    # Cap so that even an 8-row tile stays inside the per-tile budget.
    cap = max(128, _TILE_BUDGET_BYTES // (8 * itemsize))
    cap = min(cap, total)
    # Prefer a multiple of 128 -> unmasked, lane-dense vector stores.
    d = (cap // 128) * 128
    while d >= 128:
        if total % d == 0:
            return d
        d -= 128
    # Fallback: largest divisor of total within the cap (tail stores may be masked).
    d = cap
    while d >= 1:
        if total % d == 0:
            return d
        d -= 1
    return total


def _choose_row_tile(rows, cols, itemsize):
    """Pick the row-tile size tn and the number of grid steps."""
    max_tn = _TILE_BUDGET_BYTES // (cols * itemsize)
    if rows <= max(1, max_tn):
        return rows, 1  # single tile; block dims equal full dims, no (8,128) constraint
    # Tiled case: tn must be a multiple of 8 (sublane constraint on the block shape).
    max_tn = max(8, (max_tn // 8) * 8)
    tn = 0
    t = max_tn
    while t >= 8:
        if rows % t == 0:       # prefer an exact divisor (no masked tail tile)
            tn = t
            break
        t -= 8
    if tn == 0:
        tn = max_tn             # partial last tile handled by Pallas OOB masking
    steps = -(-rows // tn)
    # v7x megacore: prefer an even parallel step count so both TensorCores get equal work.
    if steps > 1 and steps % 2 == 1 and tn % 16 == 0 and rows % (tn // 2) == 0:
        tn //= 2
        steps = rows // tn
    return tn, steps


def mod_for_wrapping_forward(x):
    """z = (cat([x, x, x], dim=0)); z = z + z  — fused into one Pallas kernel."""
    orig_shape = tuple(x.shape)
    n0 = orig_shape[0]
    total = 1
    for d in orig_shape:
        total *= d
    itemsize = jnp.dtype(x.dtype).itemsize

    cols = _choose_lane_width(total, itemsize)
    rows = total // cols
    tn, steps = _choose_row_tile(rows, cols, itemsize)

    # Row-major flattening: each (rows, cols) slab is exactly x's memory layout,
    # so (3, rows, cols) reshaped to (3*n0, *rest) matches cat along dim 0.
    x2 = x.reshape(rows, cols)

    out = pl.pallas_call(
        cat_add_kernel,
        out_shape=jax.ShapeDtypeStruct((3, rows, cols), x.dtype),
        grid=(steps,),
        # Input tile depends only on the row-tile index -> fetched once per tile,
        # then stored to all three replica slabs (1 read + 3 writes of HBM).
        in_specs=[pl.BlockSpec((tn, cols), lambda i: (i, 0))],
        out_specs=pl.BlockSpec((3, tn, cols), lambda i: (0, i, 0)),
        compiler_params=pltpu.CompilerParams(
            dimension_semantics=("parallel",),
            vmem_limit_bytes=_VMEM_LIMIT_BYTES,
        ),
        cost_estimate=pl.CostEstimate(
            flops=3 * total,                       # one add per output element
            transcendentals=0,
            bytes_accessed=4 * total * itemsize,   # 1 read + 3 writes
        ),
    )(x2)

    return out.reshape((3 * n0,) + orig_shape[1:])


def reference_forward(x):
    y = jnp.concatenate([x, x, x], axis=0)
    return y + y


if __name__ == "__main__":
    key = jax.random.PRNGKey(0)
    # Small shape consistent with the module (cat over dim 0 of a 4-D activation).
    x = jax.random.normal(key, (2, 4, 16, 16), jnp.float32)

    z = mod_for_wrapping_forward(x)
    z = jax.block_until_ready(z)

    z_ref = reference_forward(x)
    assert z.shape == (6, 4, 16, 16), z.shape
    assert jnp.allclose(z, z_ref, atol=1e-6, rtol=1e-6), "mismatch vs JAX reference"

    print("KERNEL_OK")
</pallas_src>

<mosaic_0001>
module attributes {stable_mosaic.version = 11 : i64} {
  func.func @cat_add_kernel(%arg0: i32, %arg1: memref<1x2048xf32, #tpu.memory_space<vmem>>, %arg2: memref<3x1x2048xf32, #tpu.memory_space<vmem>>) attributes {dimension_semantics = [#tpu.dimension_semantics<parallel>], iteration_bounds = array<i64: 1>, scalar_prefetch = 0 : i64, scratch_operands = 0 : i64, tpu.core_type = #tpu.core_type<tc>, window_params = [{transform_indices = @transform_0, window_bounds = array<i64: 1, 2048>}, {transform_indices = @transform_1, window_bounds = array<i64: 3, 1, 2048>}]} {
    %c0 = arith.constant 0 : index
    %c0_0 = arith.constant 0 : index
    %0 = vector.load %arg1[%c0, %c0_0] : memref<1x2048xf32, #tpu.memory_space<vmem>>, vector<1x2048xf32>
    %c0_1 = arith.constant 0 : index
    %c0_2 = arith.constant 0 : index
    %1 = vector.load %arg1[%c0_1, %c0_2] : memref<1x2048xf32, #tpu.memory_space<vmem>>, vector<1x2048xf32>
    %2 = arith.addf %0, %1 : vector<1x2048xf32>
    %c0_3 = arith.constant 0 : index
    %c0_4 = arith.constant 0 : index
    %c0_5 = arith.constant 0 : index
    %3 = vector.load %arg2[%c0_3, %c0_4, %c0_5] : memref<3x1x2048xf32, #tpu.memory_space<vmem>>, vector<1x1x2048xf32>
    %4 = vector.shape_cast %3 : vector<1x1x2048xf32> to vector<1x2048xf32>
    %5 = vector.shape_cast %2 : vector<1x2048xf32> to vector<1x1x2048xf32>
    tpu.vector_store %arg2[%c0_3, %c0_4, %c0_5], %5 {strides = array<i32>} : memref<3x1x2048xf32, #tpu.memory_space<vmem>>, vector<1x1x2048xf32>,
    %c1 = arith.constant 1 : index
    %c0_6 = arith.constant 0 : index
    %c0_7 = arith.constant 0 : index
    %6 = vector.load %arg2[%c1, %c0_6, %c0_7] : memref<3x1x2048xf32, #tpu.memory_space<vmem>>, vector<1x1x2048xf32>
    %7 = vector.shape_cast %6 : vector<1x1x2048xf32> to vector<1x2048xf32>
    %8 = vector.shape_cast %2 : vector<1x2048xf32> to vector<1x1x2048xf32>
    tpu.vector_store %arg2[%c1, %c0_6, %c0_7], %8 {strides = array<i32>} : memref<3x1x2048xf32, #tpu.memory_space<vmem>>, vector<1x1x2048xf32>,
    %c2 = arith.constant 2 : index
    %c0_8 = arith.constant 0 : index
    %c0_9 = arith.constant 0 : index
    %9 = vector.load %arg2[%c2, %c0_8, %c0_9] : memref<3x1x2048xf32, #tpu.memory_space<vmem>>, vector<1x1x2048xf32>
    %10 = vector.shape_cast %9 : vector<1x1x2048xf32> to vector<1x2048xf32>
    %11 = vector.shape_cast %2 : vector<1x2048xf32> to vector<1x1x2048xf32>
    tpu.vector_store %arg2[%c2, %c0_8, %c0_9], %11 {strides = array<i32>} : memref<3x1x2048xf32, #tpu.memory_space<vmem>>, vector<1x1x2048xf32>,
    return
  }
  func.func @transform_0(%arg0: i32) -> (i32, i32) {
    %c0_i32 = arith.constant 0 : i32
    %c0_i32_0 = arith.constant 0 : i32
    return %arg0, %c0_i32 : i32, i32
  }
  func.func @transform_1(%arg0: i32) -> (i32, i32, i32) {
    %c0_i32 = arith.constant 0 : i32
    %c0_i32_0 = arith.constant 0 : i32
    %c0_i32_1 = arith.constant 0 : i32
    return %c0_i32, %arg0, %c0_i32_0 : i32, i32, i32
  }
}

</mosaic_0001>

<llo_original>
// kernel: tpu_custom_call.1
$region0: #{tpu_custom_call.1}
  #allocation0 [shape = 'u32[]', space=smem, size = 0x4, offset = 0x4, fixed_abs, tag = 'smem constant byte address 0x4 - core index']
  #allocation1 [shape = 'u32[144,128]{1,0:T(1,128)}', space=vmem, size = 0x12000, scoped, tag = 'internal scratch']
  %s0 = inlined_call_operand.hbm [shape: f32[1,2048], index: 0, kind: input, shape index: {}]
  %s1 = inlined_call_operand.hbm [shape: f32[3,1,2048], index: 1, kind: output, shape index: {}]
  %s2 = sld [smem:[#allocation0]]
  $region18: #{tpu_custom_call.1} parent=0
    _
  %s4 = ssub.s32 1, %s2
  %s5 = scalar_select 0, %s4, %s2
  $region1: #{tpu_custom_call.1} parent=0
    #allocation2 [shape = 'u8[8192]{0}', space=vmem, size = 0x2000, scoped, tag = 'input window, operand 0, single buffered']
    #allocation3 [shape = 's32[1]{0}', space=sflag, size = 0x4, scoped, tag = 'scoped memory for tpu_custom_call.1']
    #allocation4 [shape = 's32[1]{0}', space=sflag, size = 0x4, scoped, tag = 'scoped memory for tpu_custom_call.1']
    #allocation5 [shape = 'u8[24576]{0}', space=vmem, size = 0x6000, scoped, tag = 'output window, operand 0, single buffered']
    %6 = vsyncpa [#allocation3], 0
    %7 = vsyncpa [#allocation4], 0
    // Predicated region
    $region2: #{tpu_custom_call.1} parent=1 // pred_check
      _
    $region3: #{tpu_custom_call.1} parent=1 // pred_check_branch
      %9 = sbr.rel (0) target = $region5
    $region4: #{tpu_custom_call.1} parent=1 // pred_region
      %s11 = ssub.s32 256, 256
      %12 = vsyncadd [#allocation3], %s11
      %s14 = sshll.u32 [#allocation2], 4
      %s15 = int_to_ptr.vmem [resolvable:$true] %s14
      %17 = dma.hbm_to_vmem [thread:$0]  %s0, 256, %s15, [#allocation3]
    $region5: #{tpu_custom_call.1} parent=1 // pred_fallthru
      _
    // Predicated region
    $region6: #{tpu_custom_call.1} parent=1 // pred_check
      _
    $region7: #{tpu_custom_call.1} parent=1 // pred_check_branch
      %19 = sbr.rel (0) target = $region9
    $region8: #{tpu_custom_call.1} parent=1 // pred_region
      %20 = dma.done [#allocation3], 256
    $region9: #{tpu_custom_call.1} parent=1 // pred_fallthru
      _
    %v21 = vld [vmem:[#allocation2] sm:$0xff]
    %v22 = vld [vmem:[#allocation2 + $0x8] sm:$0xff]
    %v23 = vadd.f32 %v21, %v21
    %v24 = vadd.f32 %v22, %v22
    %25 = vst [vmem:[#allocation5] sm:$0xff] %v23
    %26 = vst [vmem:[#allocation5 + $0x8] sm:$0xff] %v24
    %s27 = scalar_lea.vmem [#allocation5], 16
    %28 = vst [vmem:[%s27] sm:$0xff] %v23
    %29 = vst [vmem:[%s27 + $0x8] sm:$0xff] %v24
    %s30 = scalar_lea.vmem [#allocation5], 32
    %31 = vst [vmem:[%s30] sm:$0xff] %v23
    %32 = vst [vmem:[%s30 + $0x8] sm:$0xff] %v24
    // Predicated region
    $region10: #{tpu_custom_call.1} parent=1 // pred_check
      _
    $region11: #{tpu_custom_call.1} parent=1 // pred_check_branch
      %34 = sbr.rel (0) target = $region13
    $region12: #{tpu_custom_call.1} parent=1 // pred_region
      %s36 = ssub.s32 768, 768
      %37 = vsyncadd [#allocation4], %s36
      %s38 = sshll.u32 [#allocation5], 4
      %s39 = int_to_ptr.vmem [resolvable:$true] %s38
      %44 = dma.vmem_to_hbm [thread:$0]  %s39, 768, %s1, [#allocation4], 256, 256, 16
    $region13: #{tpu_custom_call.1} parent=1 // pred_fallthru
      _
    // Predicated region
    $region14: #{tpu_custom_call.1} parent=1 // pred_check
      _
    $region15: #{tpu_custom_call.1} parent=1 // pred_check_branch
      %46 = sbr.rel (0) target = $region17
    $region16: #{tpu_custom_call.1} parent=1 // pred_region
      %47 = dma.done [#allocation4], 768
    $region17: #{tpu_custom_call.1} parent=1 // pred_fallthru
      _
    %48 = vsyncpa [#allocation3], 1
    %49 = vsyncpa [#allocation4], 1

</llo_original>
